<compile_context>
chip_gen: v7x
topology: tpu7x:2x2x1
jax: 0.10.0
libtpu: 0.0.40
codegen_flags: <defaults>
</compile_context>

<pallas_src>
import jax
import jax.numpy as jnp
from jax.experimental import pallas as pl
from jax.experimental.pallas import tpu as pltpu


_NEG = -1e30  # finite "minus infinity" sentinel (Python float -> literal, not a capture)


def _round_up(x, m):
    return (x + m - 1) // m * m


def _vmem_config():
    """(tile_budget_bytes, vmem_limit_bytes) picked per TPU generation."""
    try:
        cap = pltpu.get_tpu_info().vmem_capacity_bytes
    except Exception:  # interpret mode / unknown chip
        cap = None
    if cap is not None and cap >= 100 * 1024 * 1024:
        # v5e / v6e: 128 MiB physical VMEM.
        return 72 * 1024 * 1024, 96 * 1024 * 1024
    # v7x (64 MiB) or unknown: conservative sizing.
    return 30 * 1024 * 1024, 48 * 1024 * 1024


def _pick_tc(C):
    """Class-tile size: full C if small, else a lane-aligned divisor (no masking),
    else 2048 with tail masking."""
    TC_MAX = 2048
    if C <= TC_MAX:
        return C
    for m in range(TC_MAX // 128, 0, -1):
        if C % (m * 128) == 0:
            return m * 128
    return TC_MAX


def _pick_tiles(B, C, x_item, t_item, budget_bytes):
    row_mult = 16 if min(x_item, t_item) <= 2 else 8   # bf16 packs (16,128) sublanes
    tc = _pick_tc(C)
    # Bytes per batch row held in VMEM: 2 inputs x 2 pipeline buffers + stats
    # scratch (one (tb,4) f32 buffer padded to 128 lanes -> 512 B/row).
    row_bytes = 2 * (x_item + t_item) * tc + 512
    tb = budget_bytes // max(row_bytes, 1)
    tb = (tb // row_mult) * row_mult
    tb = max(tb, row_mult)
    tb = min(tb, _round_up(B, row_mult))
    if B > row_mult:
        # Guarantee >= 2 batch blocks so both TensorCores (v7x megacore) get work.
        tb = min(tb, _round_up(-(-B // 2), row_mult))
    tb = max(tb, row_mult)
    return tb, tc


def _soft_ce_kernel_factory(B, C, tb, tc, mask_rows, mask_cols):
    def kernel(x_ref, t_ref, o_ref, stats_ref):
        i = pl.program_id(0)            # batch-block index ("parallel")
        j = pl.program_id(1)            # class-block index (online reduction)
        nc = pl.num_programs(1)

        # ---- init running stats (lane 0: m, 1: l, 2: sum t, 3: sum x*t)
        @pl.when(j == 0)
        def _():
            lane = jax.lax.broadcasted_iota(jnp.int32, (tb, 4), 1)
            stats_ref[...] = jnp.where(lane == 0, _NEG, 0.0).astype(jnp.float32)

        x = x_ref[...].astype(jnp.float32)          # (tb, tc)
        t = t_ref[...].astype(jnp.float32)          # (tb, tc)

        if mask_cols:
            # Trimmed masking: 2 selects/element; x gets a finite sentinel so
            # exp(x - m) == 0 and x * t == 0 exactly on masked lanes.
            col = jax.lax.broadcasted_iota(jnp.int32, (1, tc), 1)
            ok = (j * tc + col) < C
            x = jnp.where(ok, x, _NEG)
            t = jnp.where(ok, t, 0.0)

        stats = stats_ref[...]                      # (tb, 4)
        m_prev = stats[:, 0:1]
        l_prev = stats[:, 1:2]
        st_prev = stats[:, 2:3]
        sxt_prev = stats[:, 3:4]

        # ---- online logsumexp + running sums over the class axis
        m_new = jnp.maximum(m_prev, jnp.max(x, axis=-1, keepdims=True))
        l_new = (l_prev * jnp.exp(m_prev - m_new)
                 + jnp.sum(jnp.exp(x - m_new), axis=-1, keepdims=True))
        st_new = st_prev + jnp.sum(t, axis=-1, keepdims=True)
        sxt_new = sxt_prev + jnp.sum(x * t, axis=-1, keepdims=True)
        stats_ref[...] = jnp.concatenate([m_new, l_new, st_new, sxt_new], axis=-1)

        # ---- finalize: per-row loss = lse * sum(t) - sum(x*t); reduce block -> scalar
        @pl.when(j == nc - 1)
        def _():
            lse = m_new + jnp.log(l_new)
            row_loss = lse * st_new - sxt_new                        # (tb, 1)
            if mask_rows:
                rid = jax.lax.broadcasted_iota(jnp.int32, (tb, 1), 0)
                row_loss = jnp.where((i * tb + rid) < B, row_loss, 0.0)
            blk = jnp.sum(row_loss)                                  # per-block scalar
            o_ref[...] = jnp.broadcast_to(blk, (1, 8, 128)).astype(jnp.float32)

    return kernel


def soft_cross_entropy_loss(x, target):
    """x, target: (B, C). Returns scalar float32 loss (PyTorch SoftCrossEntropyLoss)."""
    B, C = x.shape
    assert target.shape == (B, C)

    x_item = jnp.dtype(x.dtype).itemsize
    t_item = jnp.dtype(target.dtype).itemsize
    budget, vmem_limit = _vmem_config()
    tb, tc = _pick_tiles(B, C, x_item, t_item, budget)
    nb = pl.cdiv(B, tb)
    nc = pl.cdiv(C, tc)
    mask_rows = (B % tb) != 0
    mask_cols = (C % tc) != 0

    out = pl.pallas_call(
        _soft_ce_kernel_factory(B, C, tb, tc, mask_rows, mask_cols),
        out_shape=jax.ShapeDtypeStruct((nb, 8, 128), jnp.float32),
        grid_spec=pltpu.PrefetchScalarGridSpec(
            num_scalar_prefetch=0,
            grid=(nb, nc),
            in_specs=[
                pl.BlockSpec((tb, tc), lambda i, j: (i, j)),
                pl.BlockSpec((tb, tc), lambda i, j: (i, j)),
            ],
            # Lane-dense (1, 8, 128) per-batch-block scalar output (no masked
            # vst.msk partial stores, no (nb*tb, 1) intermediate).
            out_specs=pl.BlockSpec((1, 8, 128), lambda i, j: (i, 0, 0)),
            scratch_shapes=[
                pltpu.VMEM((tb, 4), jnp.float32),   # [m, l, sum_t, sum_xt] per row
            ],
        ),
        compiler_params=pltpu.CompilerParams(
            # batch blocks independent -> "parallel" (megacore on v7x);
            # class axis is the online reduction -> "arbitrary" (last grid axis).
            dimension_semantics=("parallel", "arbitrary"),
            vmem_limit_bytes=vmem_limit,
        ),
    )(x, target)

    # One scalar per batch block; padded/masked rows contributed exactly 0.
    return jnp.sum(out[:, 0, 0]) / float(B)


if __name__ == "__main__":
    key = jax.random.PRNGKey(0)
    k1, k2, k3, k4 = jax.random.split(key, 4)

    # -- primary small test, matching the module's (batch, classes) layout
    B, C = 16, 32
    x = jax.random.normal(k1, (B, C), dtype=jnp.float32)
    raw = jax.random.uniform(k2, (B, C), dtype=jnp.float32)
    target = raw / jnp.sum(raw, axis=1, keepdims=True)

    loss = soft_cross_entropy_loss(x, target)
    jax.block_until_ready(loss)

    ref = jnp.sum(-jax.nn.log_softmax(x, axis=1) * target) / B
    assert jnp.allclose(loss, ref, rtol=1e-5, atol=1e-5), (loss, ref)

    # -- extra sanity check: batch not divisible by the tile (exercises row masking)
    B2, C2 = 13, 48
    x2 = jax.random.normal(k3, (B2, C2), dtype=jnp.float32)
    raw2 = jax.random.uniform(k4, (B2, C2), dtype=jnp.float32)
    target2 = raw2 / jnp.sum(raw2, axis=1, keepdims=True)

    loss2 = soft_cross_entropy_loss(x2, target2)
    jax.block_until_ready(loss2)
    ref2 = jnp.sum(-jax.nn.log_softmax(x2, axis=1) * target2) / B2
    assert jnp.allclose(loss2, ref2, rtol=1e-5, atol=1e-5), (loss2, ref2)

    print("KERNEL_OK")
</pallas_src>

<mosaic_0001>
module attributes {stable_mosaic.version = 11 : i64} {
  func.func @kernel(%arg0: i32, %arg1: i32, %arg2: memref<8x32xf32, #tpu.memory_space<vmem>>, %arg3: memref<8x32xf32, #tpu.memory_space<vmem>>, %arg4: memref<1x8x128xf32, #tpu.memory_space<vmem>>, %arg5: memref<8x4xf32, #tpu.memory_space<vmem>>) attributes {dimension_semantics = [#tpu.dimension_semantics<parallel>, #tpu.dimension_semantics<arbitrary>], iteration_bounds = array<i64: 2, 1>, scalar_prefetch = 0 : i64, scratch_operands = 1 : i64, tpu.core_type = #tpu.core_type<tc>, window_params = [{transform_indices = @transform_0, window_bounds = array<i64: 8, 32>}, {transform_indices = @transform_1, window_bounds = array<i64: 8, 32>}, {transform_indices = @transform_2, window_bounds = array<i64: 1, 8, 128>}]} {
    %c0_i32 = arith.constant 0 : i32
    %0 = arith.cmpi eq, %arg1, %c0_i32 : i32
    %1 = arith.extui %0 : i1 to i32
    %c0_i32_0 = arith.constant 0 : i32
    %2 = arith.cmpi ne, %1, %c0_i32_0 : i32
    scf.if %2 {
      %34 = tpu.iota {dimensions = array<i32: 1>} : vector<8x4xi32>
      %c0_i32_13 = arith.constant 0 : i32
      %35 = vector.broadcast %c0_i32_13 : i32 to vector<8x4xi32>
      %36 = arith.cmpi eq, %34, %35 : vector<8x4xi32>
      %cst_14 = arith.constant -1.000000e+30 : f32
      %cst_15 = arith.constant 0.000000e+00 : f32
      %37 = vector.broadcast %cst_14 : f32 to vector<8x4xf32>
      %38 = vector.broadcast %cst_15 : f32 to vector<8x4xf32>
      %39 = arith.select %36, %37, %38 : vector<8x4xi1>, vector<8x4xf32>
      %c0_16 = arith.constant 0 : index
      %c0_17 = arith.constant 0 : index
      %40 = vector.load %arg5[%c0_16, %c0_17] : memref<8x4xf32, #tpu.memory_space<vmem>>, vector<8x4xf32>
      tpu.vector_store %arg5[%c0_16, %c0_17], %39 {strides = array<i32>} : memref<8x4xf32, #tpu.memory_space<vmem>>, vector<8x4xf32>,
    } else {
    }
    %c0 = arith.constant 0 : index
    %c0_1 = arith.constant 0 : index
    %3 = vector.load %arg2[%c0, %c0_1] : memref<8x32xf32, #tpu.memory_space<vmem>>, vector<8x32xf32>
    %c0_2 = arith.constant 0 : index
    %c0_3 = arith.constant 0 : index
    %4 = vector.load %arg3[%c0_2, %c0_3] : memref<8x32xf32, #tpu.memory_space<vmem>>, vector<8x32xf32>
    %c0_4 = arith.constant 0 : index
    %c0_5 = arith.constant 0 : index
    %5 = vector.load %arg5[%c0_4, %c0_5] : memref<8x4xf32, #tpu.memory_space<vmem>>, vector<8x4xf32>
    %6 = vector.extract_strided_slice %5 {offsets = [0, 0], sizes = [8, 1], strides = [1, 1]} : vector<8x4xf32> to vector<8x1xf32>
    %7 = vector.extract_strided_slice %5 {offsets = [0, 1], sizes = [8, 1], strides = [1, 1]} : vector<8x4xf32> to vector<8x1xf32>
    %8 = vector.extract_strided_slice %5 {offsets = [0, 2], sizes = [8, 1], strides = [1, 1]} : vector<8x4xf32> to vector<8x1xf32>
    %9 = vector.extract_strided_slice %5 {offsets = [0, 3], sizes = [8, 1], strides = [1, 1]} : vector<8x4xf32> to vector<8x1xf32>
    %cst = arith.constant dense<0xFF800000> : vector<8xf32>
    %10 = vector.multi_reduction <maximumf>, %3, %cst [1] : vector<8x32xf32> to vector<8xf32>
    %11 = vector.shape_cast %10 : vector<8xf32> to vector<8x1xf32>
    %12 = arith.maximumf %6, %11 : vector<8x1xf32>
    %13 = arith.subf %6, %12 : vector<8x1xf32>
    %14 = math.exp %13 : vector<8x1xf32>
    %15 = arith.mulf %7, %14 : vector<8x1xf32>
    %16 = vector.broadcast %12 : vector<8x1xf32> to vector<8x32xf32>
    %17 = arith.subf %3, %16 : vector<8x32xf32>
    %18 = math.exp %17 : vector<8x32xf32>
    %cst_6 = arith.constant dense<0.000000e+00> : vector<8xf32>
    %19 = vector.multi_reduction <add>, %18, %cst_6 [1] : vector<8x32xf32> to vector<8xf32>
    %20 = vector.shape_cast %19 : vector<8xf32> to vector<8x1xf32>
    %21 = arith.addf %15, %20 : vector<8x1xf32>
    %cst_7 = arith.constant dense<0.000000e+00> : vector<8xf32>
    %22 = vector.multi_reduction <add>, %4, %cst_7 [1] : vector<8x32xf32> to vector<8xf32>
    %23 = vector.shape_cast %22 : vector<8xf32> to vector<8x1xf32>
    %24 = arith.addf %8, %23 : vector<8x1xf32>
    %25 = arith.mulf %3, %4 : vector<8x32xf32>
    %cst_8 = arith.constant dense<0.000000e+00> : vector<8xf32>
    %26 = vector.multi_reduction <add>, %25, %cst_8 [1] : vector<8x32xf32> to vector<8xf32>
    %27 = vector.shape_cast %26 : vector<8xf32> to vector<8x1xf32>
    %28 = arith.addf %9, %27 : vector<8x1xf32>
    %29 = tpu.concatenate %12, %21, %24, %28 in 1 : vector<8x1xf32>, vector<8x1xf32>, vector<8x1xf32>, vector<8x1xf32> -> vector<8x4xf32>
    %c0_9 = arith.constant 0 : index
    %c0_10 = arith.constant 0 : index
    %30 = vector.load %arg5[%c0_9, %c0_10] : memref<8x4xf32, #tpu.memory_space<vmem>>, vector<8x4xf32>
    tpu.vector_store %arg5[%c0_9, %c0_10], %29 {strides = array<i32>} : memref<8x4xf32, #tpu.memory_space<vmem>>, vector<8x4xf32>,
    %c0_i32_11 = arith.constant 0 : i32
    %31 = arith.cmpi eq, %arg1, %c0_i32_11 : i32
    %32 = arith.extui %31 : i1 to i32
    %c0_i32_12 = arith.constant 0 : i32
    %33 = arith.cmpi ne, %32, %c0_i32_12 : i32
    scf.if %33 {
      %34 = math.log %21 : vector<8x1xf32>
      %35 = arith.addf %12, %34 : vector<8x1xf32>
      %36 = arith.mulf %35, %24 : vector<8x1xf32>
      %37 = arith.subf %36, %28 : vector<8x1xf32>
      %38 = vector.shape_cast %37 : vector<8x1xf32> to vector<1x8x1xf32>
      %cst_13 = arith.constant dense<0.000000e+00> : vector<1xf32>
      %39 = vector.multi_reduction <add>, %38, %cst_13 [1, 2] : vector<1x8x1xf32> to vector<1xf32>
      %40 = vector.shape_cast %39 : vector<1xf32> to vector<1x1x1xf32>
      %41 = vector.extract %40[0, 0, 0] : f32 from vector<1x1x1xf32>
      %42 = vector.broadcast %41 : f32 to vector<1x8x128xf32>
      %c0_14 = arith.constant 0 : index
      %c0_15 = arith.constant 0 : index
      %c0_16 = arith.constant 0 : index
      %43 = vector.load %arg4[%c0_14, %c0_15, %c0_16] : memref<1x8x128xf32, #tpu.memory_space<vmem>>, vector<1x8x128xf32>
      tpu.vector_store %arg4[%c0_14, %c0_15, %c0_16], %42 {strides = array<i32>} : memref<1x8x128xf32, #tpu.memory_space<vmem>>, vector<1x8x128xf32>,
    } else {
    }
    return
  }
  func.func @transform_0(%arg0: i32, %arg1: i32) -> (i32, i32) {
    %c0_i32 = arith.constant 0 : i32
    return %arg0, %arg1 : i32, i32
  }
  func.func @transform_1(%arg0: i32, %arg1: i32) -> (i32, i32) {
    %c0_i32 = arith.constant 0 : i32
    return %arg0, %arg1 : i32, i32
  }
  func.func @transform_2(%arg0: i32, %arg1: i32) -> (i32, i32, i32) {
    %c0_i32 = arith.constant 0 : i32
    %c0_i32_0 = arith.constant 0 : i32
    %c0_i32_1 = arith.constant 0 : i32
    return %arg0, %c0_i32, %c0_i32_0 : i32, i32, i32
  }
}

</mosaic_0001>

<llo_original>
// kernel: tpu_custom_call.1
$region0: #{tpu_custom_call.1}
  #allocation0 [shape = 'u32[]', space=smem, size = 0x4, offset = 0x4, fixed_abs, tag = 'smem constant byte address 0x4 - core index']
  #allocation1 [shape = 'u32[144,128]{1,0:T(1,128)}', space=vmem, size = 0x12000, scoped, tag = 'internal scratch']
  #allocation2 [shape = 'f32[8,4]{1,0:T(8,128)}', space=vmem, size = 0x1000, scoped, tag = 'scratch operand']
  %s0 = inlined_call_operand.hbm [shape: f32[16,32], index: 0, kind: input, shape index: {}]
  %s1 = inlined_call_operand.hbm [shape: f32[16,32], index: 1, kind: input, shape index: {}]
  %s2 = inlined_call_operand.hbm [shape: f32[2,8,128], index: 2, kind: output, shape index: {}]
  %s3 = sld [smem:[#allocation0]]
  $region57: #{tpu_custom_call.1} parent=0
    _
  %s5 = ssub.s32 1, %s3
  %s6 = scalar_select 0, %s5, %s3
  $region1: #{tpu_custom_call.1} parent=0
    #allocation3 [shape = 'u8[8192]{0}', space=vmem, size = 0x2000, scoped, tag = 'input window, operand 0']
    #allocation4 [shape = 's32[2]{0}', space=sflag, size = 0x8, scoped, tag = 'scoped memory for tpu_custom_call.1']
    #allocation5 [shape = 's32[2]{0}', space=sflag, size = 0x8, scoped, tag = 'scoped memory for tpu_custom_call.1']
    #allocation6 [shape = 'u8[8192]{0}', space=vmem, size = 0x2000, scoped, tag = 'input window, operand 1']
    #allocation7 [shape = 's32[2]{0}', space=sflag, size = 0x8, scoped, tag = 'scoped memory for tpu_custom_call.1']
    #allocation8 [shape = 'u8[8192]{0}', space=vmem, size = 0x2000, scoped, tag = 'output window, operand 0']
    %7 = vsyncpa [#allocation4], 0
    %s8 = scalar_lea.sflag [#allocation4], 1
    %9 = vsyncpa %s8, 0
    %10 = vsyncpa [#allocation7], 0
    %s11 = scalar_lea.sflag [#allocation7], 1
    %12 = vsyncpa %s11, 0
    %13 = vsyncpa [#allocation5], 0
    %s14 = scalar_lea.sflag [#allocation5], 1
    %15 = vsyncpa %s14, 0
    loop: start=0, step=1, limit=4
    $region2: #{tpu_custom_call.1} parent=1 // loop_pre_header
      _
    $region3: #{tpu_custom_call.1} parent=1 // loop_header
      %s17 = sphi 0, %s21
      %p18 = scmp.ge.s32.totalorder %s17, 4
      %s24 = sphi 0, %s36
      %s25 = sphi 0, %s32
      %s26 = sphi 0, %s24
      %s27 = sphi 0, %s25
      %s28 = sphi 0, %s26
      %s29 = sphi 0, %s27
      %s41 = sphi 0, %s43
      %s44 = sphi 0, %s41
      %s45 = sphi 0, %s44
      %s61 = sphi 0, %s45
      %s69 = sphi 0, %s71
      %s72 = sphi 0, %s69
      %s73 = sphi 0, %s72
      %s89 = sphi 0, %s73
      %s95 = sphi 0, %s97
      %s98 = sphi 0, %s95
      %s99 = sphi 0, %s98
      %s115 = sphi 0, %s99
    $region4: #{tpu_custom_call.1} parent=1 // loop_header_branch
      %20 = sbr.rel (%p18) target = $region8
    $region5: #{tpu_custom_call.1} parent=1 // loop_body
      %s22 = ssub.s32 %s17, 1
      %s23 = ssub.s32 %s17, 2
      %s30 = sadd.s32 1, %s25
      %p31 = scmp.ge.s32.totalorder %s30, 1
      %s32 = scalar_select %p31, 0, %s30
      %s33 = sadd.s32 1, %s24
      %s34 = scalar_select %p31, %s33, %s24
      %p35 = scmp.ge.s32.totalorder %s34, 2
      %s36 = scalar_select %p35, 0, %s34
      %s37 = ssub.s32 %s24, %s36
      %s38 = ssub.s32 %s25, %s32
      %s39 = sor.u32 %s37, %s38
      %p40 = scmp.eq.s32.totalorder %s39, 0
      %s42 = sadd.s32 %s41, 1
      %s43 = scalar_select %p40, %s41, %s42
      %p46 = pneg %p40
      %p47 = scmp.eq.s32.totalorder %s17, 1
      %p48 = por %p46, %p47
      %p49 = scmp.ne.s32.totalorder %s41, %s44
      %p50 = scmp.eq.s32.totalorder %s17, 0
      %p51 = por %p49, %p50
      %p52 = scmp.ne.s32.totalorder %s41, %s44
      %p53 = scmp.eq.s32.totalorder %s22, 1
      %p54 = por %p52, %p53
      %p55 = scmp.ne.s32.totalorder %s44, %s45
      %p56 = scmp.eq.s32.totalorder %s22, 0
      %p57 = por %p55, %p56
      %p58 = scmp.ne.s32.totalorder %s44, %s45
      %p59 = scmp.eq.s32.totalorder %s23, 1
      %p60 = por %p58, %p59
      %p62 = scmp.ne.s32.totalorder %s45, %s61
      %p63 = scmp.eq.s32.totalorder %s23, 0
      %p64 = por %p62, %p63
      %s65 = ssub.s32 %s24, %s36
      %s66 = ssub.s32 %s25, %s32
      %s67 = sor.u32 %s65, %s66
      %p68 = scmp.eq.s32.totalorder %s67, 0
      %s70 = sadd.s32 %s69, 1
      %s71 = scalar_select %p68, %s69, %s70
      %p74 = pneg %p68
      %p75 = scmp.eq.s32.totalorder %s17, 1
      %p76 = por %p74, %p75
      %p77 = scmp.ne.s32.totalorder %s69, %s72
      %p78 = scmp.eq.s32.totalorder %s17, 0
      %p79 = por %p77, %p78
      %p80 = scmp.ne.s32.totalorder %s69, %s72
      %p81 = scmp.eq.s32.totalorder %s22, 1
      %p82 = por %p80, %p81
      %p83 = scmp.ne.s32.totalorder %s72, %s73
      %p84 = scmp.eq.s32.totalorder %s22, 0
      %p85 = por %p83, %p84
      %p86 = scmp.ne.s32.totalorder %s72, %s73
      %p87 = scmp.eq.s32.totalorder %s23, 1
      %p88 = por %p86, %p87
      %p90 = scmp.ne.s32.totalorder %s73, %s89
      %p91 = scmp.eq.s32.totalorder %s23, 0
      %p92 = por %p90, %p91
      %s93 = ssub.s32 %s24, %s36
      %p94 = scmp.eq.s32.totalorder %s93, 0
      %s96 = sadd.s32 %s95, 1
      %s97 = scalar_select %p94, %s95, %s96
      %p100 = pneg %p94
      %p101 = scmp.eq.s32.totalorder %s17, 1
      %p102 = por %p100, %p101
      %p103 = scmp.ne.s32.totalorder %s95, %s98
      %p104 = scmp.eq.s32.totalorder %s17, 0
      %p105 = por %p103, %p104
      %p106 = scmp.ne.s32.totalorder %s95, %s98
      %p107 = scmp.eq.s32.totalorder %s22, 1
      %p108 = por %p106, %p107
      %p109 = scmp.ne.s32.totalorder %s98, %s99
      %p110 = scmp.eq.s32.totalorder %s22, 0
      %p111 = por %p109, %p110
      %p112 = scmp.ne.s32.totalorder %s98, %s99
      %p113 = scmp.eq.s32.totalorder %s23, 1
      %p114 = por %p112, %p113
      %p116 = scmp.ne.s32.totalorder %s99, %s115
      %p117 = scmp.eq.s32.totalorder %s23, 0
      %p118 = por %p116, %p117
      %p119 = scmp.le.s32.totalorder 1, %s17
      %p120 = scmp.lt.s32.totalorder %s17, 3
      %p121 = pnand %p119, %p120
      %p122 = pneg %p121
      // Predicated region
      $region9: #{tpu_custom_call.1} parent=5 // pred_check
        _
      $region10: #{tpu_custom_call.1} parent=5 // pred_check_branch
        %124 = sbr.rel (%p121) target = $region12
      $region11: #{tpu_custom_call.1} parent=5 // pred_region
        %s125 = ssub.s32 %s17, 1
      $region12: #{tpu_custom_call.1} parent=5 // pred_fallthru
        _
      %p126 = scmp.lt.s32.totalorder %s17, 2
      // Predicated region
      $region13: #{tpu_custom_call.1} parent=5 // pred_check
        %p127 = pneg %p126
      $region14: #{tpu_custom_call.1} parent=5 // pred_check_branch
        %129 = sbr.rel (%p127) target = $region16
      $region15: #{tpu_custom_call.1} parent=5 // pred_region
        // Predicated region
        $region17: #{tpu_custom_call.1} parent=15 // pred_check
          %p130 = pneg %p51
        $region18: #{tpu_custom_call.1} parent=15 // pred_check_branch
          %132 = sbr.rel (%p130) target = $region20
        $region19: #{tpu_custom_call.1} parent=15 // pred_region
          %s133 = sand.u32 %s41, 1
          %s134 = scalar_lea.sflag [#allocation4], %s133
          %s135 = sand.u32 %s41, 1
          %s136 = smul.addr %s135, 8
          %s137 = scalar_lea.vmem [#allocation3], %s136
          %s139 = ssub.s32 128, 128
          %140 = vsyncadd %s134, %s139
          %s141 = sadd.s32 %s25, %s24
          %s142 = smul.addr %s141, 128
          %s143 = scalar_lea.hbm %s0, %s142
          %s145 = sshll.u32 %s137, 4
          %s146 = int_to_ptr.vmem [resolvable:$true] %s145
          %148 = dma.hbm_to_vmem [thread:$0]  %s143, 128, %s146, %s134
        $region20: #{tpu_custom_call.1} parent=15 // pred_fallthru
          _
        // Predicated region
        $region21: #{tpu_custom_call.1} parent=15 // pred_check
          %p149 = pneg %p79
        $region22: #{tpu_custom_call.1} parent=15 // pred_check_branch
          %151 = sbr.rel (%p149) target = $region24
        $region23: #{tpu_custom_call.1} parent=15 // pred_region
          %s152 = sand.u32 %s69, 1
          %s153 = scalar_lea.sflag [#allocation7], %s152
          %s154 = sand.u32 %s69, 1
          %s155 = smul.addr %s154, 8
          %s156 = scalar_lea.vmem [#allocation6], %s155
          %s158 = ssub.s32 128, 128
          %159 = vsyncadd %s153, %s158
          %s160 = sadd.s32 %s25, %s24
          %s161 = smul.addr %s160, 128
          %s162 = scalar_lea.hbm %s1, %s161
          %s164 = sshll.u32 %s156, 4
          %s165 = int_to_ptr.vmem [resolvable:$true] %s164
          %167 = dma.hbm_to_vmem [thread:$0]  %s162, 128, %s165, %s153
        $region24: #{tpu_custom_call.1} parent=15 // pred_fallthru
          _
      $region16: #{tpu_custom_call.1} parent=5 // pred_fallthru
        _
      %p168 = scmp.le.s32.totalorder 1, %s17
      %p169 = scmp.lt.s32.totalorder %s17, 3
      %p170 = pnand %p168, %p169
      %p171 = pneg %p170
      // Predicated region
      $region25: #{tpu_custom_call.1} parent=5 // pred_check
        _
      $region26: #{tpu_custom_call.1} parent=5 // pred_check_branch
        %173 = sbr.rel (%p170) target = $region28
      $region27: #{tpu_custom_call.1} parent=5 // pred_region
        %s174 = ssub.s32 %s17, 1
        %s175 = sand.u32 %s44, 1
        %s176 = scalar_lea.sflag [#allocation4], %s175
        %s177 = sand.u32 %s44, 1
        %s178 = smul.addr %s177, 8
        %s179 = scalar_lea.vmem [#allocation3], %s178
        // Predicated region
        $region29: #{tpu_custom_call.1} parent=27 // pred_check
          %p180 = pneg %p57
        $region30: #{tpu_custom_call.1} parent=27 // pred_check_branch
          %182 = sbr.rel (%p180) target = $region32
        $region31: #{tpu_custom_call.1} parent=27 // pred_region
          %183 = dma.done %s176, 128
        $region32: #{tpu_custom_call.1} parent=27 // pred_fallthru
          _
        %s184 = sand.u32 %s72, 1
        %s185 = scalar_lea.sflag [#allocation7], %s184
        %s186 = sand.u32 %s72, 1
        %s187 = smul.addr %s186, 8
        %s188 = scalar_lea.vmem [#allocation6], %s187
        // Predicated region
        $region33: #{tpu_custom_call.1} parent=27 // pred_check
          %p189 = pneg %p85
        $region34: #{tpu_custom_call.1} parent=27 // pred_check_branch
          %191 = sbr.rel (%p189) target = $region36
        $region35: #{tpu_custom_call.1} parent=27 // pred_region
          %192 = dma.done %s185, 128
        $region36: #{tpu_custom_call.1} parent=27 // pred_fallthru
          _
        %s193 = sand.u32 %s44, 1
        %s194 = scalar_lea.sflag [#allocation4], %s193
        %s195 = sand.u32 %s44, 1
        %s196 = smul.addr %s195, 8
        %s197 = scalar_lea.vmem [#allocation3], %s196
        %p198 = pneg %p57
        %p199 = pneg %p54
        %s200 = sand.u32 %s72, 1
        %s201 = scalar_lea.sflag [#allocation7], %s200
        %s202 = sand.u32 %s72, 1
        %s203 = smul.addr %s202, 8
        %s204 = scalar_lea.vmem [#allocation6], %s203
        %p205 = pneg %p85
        %p206 = pneg %p82
        %p207 = pneg %p111
        %p208 = pneg %p108
        %s209 = sand.u32 %s98, 1
        %s210 = scalar_lea.sflag [#allocation5], %s209
        %s211 = sand.u32 %s98, 1
        %s212 = smul.addr %s211, 8
        %s213 = scalar_lea.vmem [#allocation8], %s212
        %p214 = scmp.eq.s32.totalorder %s27, 0
        // Predicated region
        $region37: #{tpu_custom_call.1} parent=27 // pred_check
          %p215 = pneg %p214
        $region38: #{tpu_custom_call.1} parent=27 // pred_check_branch
          %217 = sbr.rel (%p215) target = $region40
        $region39: #{tpu_custom_call.1} parent=27 // pred_region
          %v218 = vlaneseq
          %v219 = vand.u32 %v218, 127
          %vm220 = vcmp.eq.s32.totalorder %v219, 0
          %v221 = vsel %vm220, -1e+30, 0.0
          %vm222 = vcmask 31744
          %223 = vst.msk [vmem:[#allocation2] sm:$0xff] %vm222, %v221
        $region40: #{tpu_custom_call.1} parent=27 // pred_fallthru
          _
        %v224 = vld [vmem:[%s179] sm:$0xff]
        %v225 = vld [vmem:[%s188] sm:$0xff]
        %v226 = vld [vmem:[#allocation2] sm:$0xff]
        %vm227 = vcmask 261120
        %v228 = vsel %vm227, %v224, -inf
        %229 = vmax.xlane.f32.xlu0 %v228
        %v230 = vpop.xlane.xlu0 %229
        %v231 = vmax.f32 %v226, %v230
        %v232 = vsub.f32 %v226, %v231
        %v233 = vmul.f32 %v232, 1.442695
        %v234 = vpow.pop %v233
        %236 = vrot.lane.b32.xlu0 %v234, 1
        %v237 = vpop.permute.xlu0 %236
        %v239 = vmul.f32 %v226, %v237
        %241 = vset.pattern.permute.xlu0 0
        %242 = vperm.xlu0 %241, %v231
        %v243 = vpop.permute.xlu0 %242
        %v245 = vsub.f32 %v224, %v243
        %v246 = vmul.f32 %v245, 1.442695
        %v247 = vpow.pop %v246
        %v248 = vsel %vm227, %v247, 0.0
        %249 = vadd.xlane.f32.xlu0 %v248
        %v250 = vpop.xlane.xlu0 %249
        %v251 = vadd.f32 %v239, %v250
        %v252 = vsel %vm227, %v225, 0.0
        %253 = vadd.xlane.f32.xlu0 %v252
        %v254 = vpop.xlane.xlu0 %253
        %v255 = vadd.f32 %v226, %v254
        %v256 = vmul.f32 %v224, %v225
        %v257 = vsel %vm227, %v256, 0.0
        %258 = vadd.xlane.f32.xlu0 %v257
        %v259 = vpop.xlane.xlu0 %258
        %v260 = vadd.f32 %v226, %v259
        %vm261 = vcmask 7168
        %v262 = vsel %vm261, %v231, %v251
        %vm263 = vcmask 15360
        %v264 = vsel %vm263, %v262, %v255
        %vm265 = vcmask 23552
        %v266 = vsel %vm265, %v264, %v260
        %vm267 = vcmask 31744
        %268 = vst.msk [vmem:[#allocation2] sm:$0xff] %vm267, %v266
        // Predicated region
        $region41: #{tpu_custom_call.1} parent=27 // pred_check
          %p269 = pneg %p214
        $region42: #{tpu_custom_call.1} parent=27 // pred_check_branch
          %271 = sbr.rel (%p269) target = $region44
        $region43: #{tpu_custom_call.1} parent=27 // pred_region
          %v272 = vlog2.pop %v251
          %v273 = vmul.f32 %v272, 0.6931472
          %275 = vrot.lane.b32.xlu0 %v273, 127
          %v276 = vpop.permute.xlu0 %275
          %v278 = vadd.f32 %v231, %v276
          %280 = vrot.lane.b32.xlu0 %v255, 126
          %v281 = vpop.permute.xlu0 %280
          %v283 = vmul.f32 %v278, %v281
          %285 = vrot.lane.b32.xlu0 %v260, 125
          %v286 = vpop.permute.xlu0 %285
          %v288 = vsub.f32 %v283, %v286
          %v289 = vsel %vm261, %v288, 0.0
          %290 = vadd.xlane.f32.xlu0 %v289
          %v291 = vpop.xlane.xlu0 %290
          %v292 = vrot.slane %v291, 4
          %v293 = vadd.f32 %v291, %v292
          %v294 = vrot.slane %v293, 2
          %v295 = vadd.f32 %v293, %v294
          %v296 = vrot.slane %v295, 1
          %v297 = vadd.f32 %v295, %v296
          %s298 = vtos %v297
          %v299 = vstv %s298
          %300 = vst [vmem:[%s213] sm:$0xff] %v299
        $region44: #{tpu_custom_call.1} parent=27 // pred_fallthru
          _
        %s301 = sand.u32 %s98, 1
        %s302 = scalar_lea.sflag [#allocation5], %s301
        %s303 = sand.u32 %s98, 1
        %s304 = smul.addr %s303, 8
        %s305 = scalar_lea.vmem [#allocation8], %s304
        // Predicated region
        $region45: #{tpu_custom_call.1} parent=27 // pred_check
          %p306 = pneg %p108
        $region46: #{tpu_custom_call.1} parent=27 // pred_check_branch
          %308 = sbr.rel (%p306) target = $region48
        $region47: #{tpu_custom_call.1} parent=27 // pred_region
          %s310 = ssub.s32 128, 128
          %311 = vsyncadd %s302, %s310
          %s312 = smul.addr %s26, 128
          %s313 = scalar_lea.hbm %s2, %s312
          %s315 = sshll.u32 %s305, 4
          %s316 = int_to_ptr.vmem [resolvable:$true] %s315
          %318 = dma.vmem_to_hbm [thread:$0]  %s316, 128, %s313, %s302
        $region48: #{tpu_custom_call.1} parent=27 // pred_fallthru
          _
      $region28: #{tpu_custom_call.1} parent=5 // pred_fallthru
        _
      %p319 = scmp.le.s32.totalorder 2, %s17
      // Predicated region
      $region49: #{tpu_custom_call.1} parent=5 // pred_check
        %p320 = pneg %p319
      $region50: #{tpu_custom_call.1} parent=5 // pred_check_branch
        %322 = sbr.rel (%p320) target = $region52
      $region51: #{tpu_custom_call.1} parent=5 // pred_region
        %s323 = ssub.s32 %s17, 2
        // Predicated region
        $region53: #{tpu_custom_call.1} parent=51 // pred_check
          %p324 = pneg %p114
        $region54: #{tpu_custom_call.1} parent=51 // pred_check_branch
          %326 = sbr.rel (%p324) target = $region56
        $region55: #{tpu_custom_call.1} parent=51 // pred_region
          %s327 = sand.u32 %s99, 1
          %s328 = scalar_lea.sflag [#allocation5], %s327
          %s329 = sand.u32 %s99, 1
          %s330 = smul.addr %s329, 8
          %s331 = scalar_lea.vmem [#allocation8], %s330
          %332 = dma.done %s328, 128
        $region56: #{tpu_custom_call.1} parent=51 // pred_fallthru
          _
      $region52: #{tpu_custom_call.1} parent=5 // pred_fallthru
        _
    $region6: #{tpu_custom_call.1} parent=1 // loop_footer
      %s21 = sadd.s32 1, %s17
    $region7: #{tpu_custom_call.1} parent=1 // loop_footer_branch
      %16 = sbr.rel target = $region3
    $region8: #{tpu_custom_call.1} parent=1 // loop_exit
      _
    %333 = vsyncpa [#allocation4], 1
    %s334 = scalar_lea.sflag [#allocation4], 1
    %335 = vsyncpa %s334, 1
    %336 = vsyncpa [#allocation7], 1
    %s337 = scalar_lea.sflag [#allocation7], 1
    %338 = vsyncpa %s337, 1
    %339 = vsyncpa [#allocation5], 1
    %s340 = scalar_lea.sflag [#allocation5], 1
    %341 = vsyncpa %s340, 1

</llo_original>
